<compile_context>
chip_gen: v6e
topology: v6e:2x2x1
jax: 0.10.0
libtpu: 0.0.40
codegen_flags: <defaults>
</compile_context>

<pallas_src>
import functools

import jax
import jax.numpy as jnp
from jax import lax
from jax.experimental import pallas as pl
from jax.experimental.pallas import tpu as pltpu

DIM_EMBEDDING = 100
RNN_HIDDEN = 50


def _round_up(x, m):
    return ((x + m - 1) // m) * m


def rnn_tag_kernel(ids_ref, emb_ref, w_ih_ref, w_hh_ref, b_h_ref,
                   w_out_ref, b_out_ref, out_ref, h_carry, hs_scr,
                   *, steps_per_chunk, batch_chunk, vocab_pad):
    """One (batch_chunk, time_chunk) tile of the RNN tagger.

    ids_ref:   (Tc*Bc, 1)     int32 ids, row r = t_in_chunk*Bc + b_in_chunk
    emb_ref:   (V_pad, D_pad) bf16 embedding table (VMEM resident)
    w_ih_ref:  (D_pad, H_pad) bf16
    w_hh_ref:  (H_pad, H_pad) bf16
    b_h_ref:   (1, H_pad)     f32  (b_ih + b_hh, padded lanes = 0)
    w_out_ref: (H_pad, K_pad) bf16 (padded rows/cols = 0)
    b_out_ref: (1, K_pad)     f32  (padded lanes = -1e30)
    out_ref:   (Tc*Bc, K_pad) f32 log-softmax scores
    h_carry:   (Bc, H_pad)    f32 hidden state carried across time chunks
    hs_scr:    (Tc*Bc, H_pad) f32 xw staging, overwritten by hidden states
    """
    # Reset the carried hidden state at the start of each batch chunk's sweep.
    @pl.when(pl.program_id(1) == 0)
    def _():
        h_carry[...] = jnp.zeros_like(h_carry)

    rows = steps_per_chunk * batch_chunk

    # In-kernel embedding gather (one-hot MXU matmul) fused with the hoisted
    # input projection — no time dependence, runs off the serial path.
    # TODO(synk): for large vocabularies replace the one-hot matmul with a
    # manual DMA row-gather from an HBM-resident table.
    ids = ids_ref[...]                                              # (rows, 1)
    lanes = lax.broadcasted_iota(jnp.int32, (rows, vocab_pad), 1)
    onehot = jnp.where(lanes == ids, 1.0, 0.0).astype(jnp.bfloat16)
    x = jnp.dot(onehot, emb_ref[...],
                preferred_element_type=jnp.float32)                 # (rows, D_pad)
    hs_scr[...] = (jnp.dot(x.astype(jnp.bfloat16), w_ih_ref[...],
                           preferred_element_type=jnp.float32)
                   + b_h_ref[...])                                  # xw staged

    # Serial recurrence: only the tiny (Bc,H_pad)x(H_pad,H_pad) dot + tanh
    # stays timestep-serial.  Static unroll bounded by the chunk size Tc.
    w_hh = w_hh_ref[...]
    h = h_carry[...]
    for t in range(steps_per_chunk):
        lo = t * batch_chunk                          # static, sublane-aligned
        h = jnp.tanh(hs_scr[lo:lo + batch_chunk, :]
                     + jnp.dot(h.astype(jnp.bfloat16), w_hh,
                               preferred_element_type=jnp.float32))
        hs_scr[lo:lo + batch_chunk, :] = h            # overwrite xw in place
    h_carry[...] = h

    # Batched tag head + log_softmax over the whole chunk (f32 reductions;
    # padded tag lanes carry bias -1e30 so exp underflows to 0).
    logits = (jnp.dot(hs_scr[...].astype(jnp.bfloat16), w_out_ref[...],
                      preferred_element_type=jnp.float32)
              + b_out_ref[...])
    m = jnp.max(logits, axis=-1, keepdims=True)
    lse = m + jnp.log(jnp.sum(jnp.exp(logits - m), axis=-1, keepdims=True))
    out_ref[...] = logits - lse


@functools.partial(jax.jit, static_argnames=("time_chunk", "batch_chunk"))
def simple_rnn_forward(sentences, params, *, time_chunk=4, batch_chunk=8):
    """sentences: (B, T) int32 token ids.  Returns (B, T, tagset) float32."""
    emb = params["embedding"]                           # (V, D)
    B, T = sentences.shape
    V, D = emb.shape
    H = params["w_hh"].shape[0]
    K = params["w_out"].shape[1]

    Bc = batch_chunk                                    # multiple of 8 (sublanes)
    Tc = min(time_chunk, T)
    B_pad = _round_up(B, Bc)
    T_pad = _round_up(T, Tc)
    V_pad = _round_up(V, 128)
    D_pad = _round_up(D, 128)
    H_pad = _round_up(H, 128)
    K_pad = _round_up(K, 128)
    n_bc = B_pad // Bc
    n_tc = T_pad // Tc

    # Only the tiny int32 id matrix is padded / reshaped (4 B per token); the
    # embedded (T,B,D) tensor is never materialized in HBM.
    ids = jnp.pad(sentences.astype(jnp.int32),
                  ((0, B_pad - B), (0, T_pad - T)))     # (B_pad, T_pad)
    ids = ids.reshape(n_bc, Bc, T_pad)
    ids = jnp.transpose(ids, (0, 2, 1)).reshape(n_bc, T_pad * Bc, 1)

    # Lane-dense, zero-padded parameters (bf16 MXU operands, f32 biases).
    emb_p = jnp.pad(emb, ((0, V_pad - V), (0, D_pad - D))).astype(jnp.bfloat16)
    w_ih = jnp.pad(params["w_ih"],
                   ((0, D_pad - D), (0, H_pad - H))).astype(jnp.bfloat16)
    w_hh = jnp.pad(params["w_hh"],
                   ((0, H_pad - H), (0, H_pad - H))).astype(jnp.bfloat16)
    b_h = jnp.pad(params["b_h"], (0, H_pad - H)).reshape(1, H_pad)
    b_h = b_h.astype(jnp.float32)                       # padded lanes = 0
    w_out = jnp.pad(params["w_out"],
                    ((0, H_pad - H), (0, K_pad - K))).astype(jnp.bfloat16)
    b_out = jnp.pad(params["b_out"].reshape(1, K), ((0, 0), (0, K_pad - K)),
                    constant_values=-1e30).astype(jnp.float32)

    kernel = functools.partial(rnn_tag_kernel, steps_per_chunk=Tc,
                               batch_chunk=Bc, vocab_pad=V_pad)

    out = pl.pallas_call(
        kernel,
        out_shape=jax.ShapeDtypeStruct((n_bc, T_pad * Bc, K_pad), jnp.float32),
        grid=(n_bc, n_tc),
        in_specs=[
            pl.BlockSpec((None, Tc * Bc, 1), lambda bi, ti: (bi, ti, 0)),
            pl.BlockSpec((V_pad, D_pad), lambda bi, ti: (0, 0)),
            pl.BlockSpec((D_pad, H_pad), lambda bi, ti: (0, 0)),
            pl.BlockSpec((H_pad, H_pad), lambda bi, ti: (0, 0)),
            pl.BlockSpec((1, H_pad), lambda bi, ti: (0, 0)),
            pl.BlockSpec((H_pad, K_pad), lambda bi, ti: (0, 0)),
            pl.BlockSpec((1, K_pad), lambda bi, ti: (0, 0)),
        ],
        out_specs=pl.BlockSpec((None, Tc * Bc, K_pad),
                               lambda bi, ti: (bi, ti, 0)),
        scratch_shapes=[pltpu.VMEM((Bc, H_pad), jnp.float32),
                        pltpu.VMEM((Tc * Bc, H_pad), jnp.float32)],
        compiler_params=pltpu.CompilerParams(
            dimension_semantics=("parallel", "arbitrary"),
            vmem_limit_bytes=32 * 1024 * 1024),
    )(ids, emb_p, w_ih, w_hh, b_h, w_out, b_out)

    # Tiny fused unpad: (n_bc, T_pad*Bc, K_pad) -> (B, T, K) batch-first.
    out = out.reshape(n_bc, T_pad, Bc, K_pad)
    out = jnp.transpose(out, (0, 2, 1, 3)).reshape(B_pad, T_pad, K_pad)
    return out[:B, :T, :K]


def init_params(key, vocab_size, tagset_size):
    """Deterministic parameter init (shapes match the torch module)."""
    kE, k1, k2, k3, k4, k5, k6 = jax.random.split(key, 7)
    H, D = RNN_HIDDEN, DIM_EMBEDDING
    s_rnn = 1.0 / jnp.sqrt(H)
    s_lin = 1.0 / jnp.sqrt(H)
    return {
        "embedding": jax.random.normal(kE, (vocab_size, D), jnp.float32),
        # stored pre-transposed so the kernel does x @ W directly
        "w_ih": jax.random.uniform(k1, (D, H), jnp.float32, -s_rnn, s_rnn),
        "w_hh": jax.random.uniform(k2, (H, H), jnp.float32, -s_rnn, s_rnn),
        "b_h": (jax.random.uniform(k3, (H,), jnp.float32, -s_rnn, s_rnn)
                + jax.random.uniform(k4, (H,), jnp.float32, -s_rnn, s_rnn)),
        "w_out": jax.random.uniform(k5, (H, tagset_size), jnp.float32,
                                    -s_lin, s_lin),
        "b_out": jax.random.uniform(k6, (tagset_size,), jnp.float32,
                                    -s_lin, s_lin),
    }


def reference_forward(sentences, params):
    """Pure-JAX f32 reference for a sanity check."""
    embeds = jnp.take(params["embedding"], sentences, axis=0)  # (B,T,D)
    B, T, D = embeds.shape
    H = RNN_HIDDEN

    def step(h, x_t):
        h_new = jnp.tanh(x_t @ params["w_ih"] + h @ params["w_hh"]
                         + params["b_h"])
        return h_new, h_new

    x_tmajor = jnp.transpose(embeds, (1, 0, 2))
    _, hs = jax.lax.scan(step, jnp.zeros((B, H), jnp.float32), x_tmajor)
    rnn_out = jnp.transpose(hs, (1, 0, 2))                      # (B,T,H)
    logits = rnn_out @ params["w_out"] + params["b_out"]        # (B,T,K)
    return jax.nn.log_softmax(logits, axis=2)


if __name__ == "__main__":
    VOCAB_SIZE = 30
    TAGSET_SIZE = 10
    B, T = 2, 8

    key = jax.random.PRNGKey(0)
    k_params, k_sent = jax.random.split(key)
    params = init_params(k_params, VOCAB_SIZE, TAGSET_SIZE)
    sentences = jax.random.randint(k_sent, (B, T), 0, VOCAB_SIZE, jnp.int32)

    tag_scores = simple_rnn_forward(sentences, params)
    tag_scores = jax.block_until_ready(tag_scores)
    assert tag_scores.shape == (B, T, TAGSET_SIZE)

    ref = jax.block_until_ready(reference_forward(sentences, params))
    # bf16 MXU operands vs. f32 reference: loosened tolerance.
    assert jnp.allclose(tag_scores, ref, rtol=0.0, atol=5e-2), "mismatch vs reference"

    print("KERNEL_OK")
</pallas_src>

<mosaic_0001>
module attributes {stable_mosaic.version = 11 : i64} {
  func.func @rnn_tag_kernel(%arg0: i32, %arg1: i32, %arg2: memref<1x32x1xi32, #tpu.memory_space<vmem>>, %arg3: memref<128x128xbf16, #tpu.memory_space<vmem>>, %arg4: memref<128x128xbf16, #tpu.memory_space<vmem>>, %arg5: memref<128x128xbf16, #tpu.memory_space<vmem>>, %arg6: memref<1x128xf32, #tpu.memory_space<vmem>>, %arg7: memref<128x128xbf16, #tpu.memory_space<vmem>>, %arg8: memref<1x128xf32, #tpu.memory_space<vmem>>, %arg9: memref<1x32x128xf32, #tpu.memory_space<vmem>>, %arg10: memref<8x128xf32, #tpu.memory_space<vmem>>, %arg11: memref<32x128xf32, #tpu.memory_space<vmem>>) attributes {dimension_semantics = [#tpu.dimension_semantics<parallel>, #tpu.dimension_semantics<arbitrary>], iteration_bounds = array<i64: 1, 2>, scalar_prefetch = 0 : i64, scratch_operands = 2 : i64, tpu.core_type = #tpu.core_type<tc>, window_params = [{transform_indices = @transform_0, window_bounds = array<i64: 1, 32, 1>}, {pipeline_mode = #tpu.pipeline_mode<synchronous>, transform_indices = @transform_1, window_bounds = array<i64: 128, 128>}, {pipeline_mode = #tpu.pipeline_mode<synchronous>, transform_indices = @transform_2, window_bounds = array<i64: 128, 128>}, {pipeline_mode = #tpu.pipeline_mode<synchronous>, transform_indices = @transform_3, window_bounds = array<i64: 128, 128>}, {pipeline_mode = #tpu.pipeline_mode<synchronous>, transform_indices = @transform_4, window_bounds = array<i64: 1, 128>}, {pipeline_mode = #tpu.pipeline_mode<synchronous>, transform_indices = @transform_5, window_bounds = array<i64: 128, 128>}, {pipeline_mode = #tpu.pipeline_mode<synchronous>, transform_indices = @transform_6, window_bounds = array<i64: 1, 128>}, {transform_indices = @transform_7, window_bounds = array<i64: 1, 32, 128>}]} {
    %c0_i32 = arith.constant 0 : i32
    %0 = arith.cmpi eq, %arg1, %c0_i32 : i32
    %1 = arith.extui %0 : i1 to i32
    %c0_i32_0 = arith.constant 0 : i32
    %2 = arith.cmpi ne, %1, %c0_i32_0 : i32
    scf.if %2 {
      %cst_49 = arith.constant 0.000000e+00 : f32
      %69 = vector.broadcast %cst_49 : f32 to vector<8x128xf32>
      %c0_50 = arith.constant 0 : index
      %c0_51 = arith.constant 0 : index
      %70 = vector.load %arg10[%c0_50, %c0_51] : memref<8x128xf32, #tpu.memory_space<vmem>>, vector<8x128xf32>
      tpu.vector_store %arg10[%c0_50, %c0_51], %69 {strides = array<i32>} : memref<8x128xf32, #tpu.memory_space<vmem>>, vector<8x128xf32>,
    } else {
    }
    %c0 = arith.constant 0 : index
    %c0_1 = arith.constant 0 : index
    %c0_2 = arith.constant 0 : index
    %3 = vector.load %arg2[%c0, %c0_1, %c0_2] : memref<1x32x1xi32, #tpu.memory_space<vmem>>, vector<1x32x1xi32>
    %4 = vector.shape_cast %3 : vector<1x32x1xi32> to vector<32x1xi32>
    %5 = tpu.iota {dimensions = array<i32: 1>} : vector<32x128xi32>
    %6 = vector.broadcast %4 : vector<32x1xi32> to vector<32x128xi32>
    %7 = arith.cmpi eq, %5, %6 : vector<32x128xi32>
    %cst = arith.constant 1.000000e+00 : f32
    %cst_3 = arith.constant 0.000000e+00 : f32
    %8 = vector.broadcast %cst : f32 to vector<32x128xf32>
    %9 = vector.broadcast %cst_3 : f32 to vector<32x128xf32>
    %10 = arith.select %7, %8, %9 : vector<32x128xi1>, vector<32x128xf32>
    %11 = arith.truncf %10 : vector<32x128xf32> to vector<32x128xbf16>
    %c0_4 = arith.constant 0 : index
    %c0_5 = arith.constant 0 : index
    %12 = vector.load %arg3[%c0_4, %c0_5] : memref<128x128xbf16, #tpu.memory_space<vmem>>, vector<128x128xbf16>
    %cst_6 = arith.constant dense<0.000000e+00> : vector<32x128xf32>
    %13 = tpu.matmul %11, %12, %cst_6 {dimension_numbers = #tpu.dot_dimension_numbers<[1], [0], [0], [1], [0, 0, 1, 1], [], []>} : vector<32x128xbf16>, vector<128x128xbf16>, vector<32x128xf32> -> vector<32x128xf32>
    %14 = arith.truncf %13 : vector<32x128xf32> to vector<32x128xbf16>
    %c0_7 = arith.constant 0 : index
    %c0_8 = arith.constant 0 : index
    %15 = vector.load %arg4[%c0_7, %c0_8] : memref<128x128xbf16, #tpu.memory_space<vmem>>, vector<128x128xbf16>
    %cst_9 = arith.constant dense<0.000000e+00> : vector<32x128xf32>
    %16 = tpu.matmul %14, %15, %cst_9 {dimension_numbers = #tpu.dot_dimension_numbers<[1], [0], [0], [1], [0, 0, 1, 1], [], []>} : vector<32x128xbf16>, vector<128x128xbf16>, vector<32x128xf32> -> vector<32x128xf32>
    %c0_10 = arith.constant 0 : index
    %c0_11 = arith.constant 0 : index
    %17 = vector.load %arg6[%c0_10, %c0_11] : memref<1x128xf32, #tpu.memory_space<vmem>>, vector<1x128xf32>
    %18 = vector.broadcast %17 : vector<1x128xf32> to vector<32x128xf32>
    %19 = arith.addf %16, %18 : vector<32x128xf32>
    %c0_12 = arith.constant 0 : index
    %c0_13 = arith.constant 0 : index
    %20 = vector.load %arg11[%c0_12, %c0_13] : memref<32x128xf32, #tpu.memory_space<vmem>>, vector<32x128xf32>
    tpu.vector_store %arg11[%c0_12, %c0_13], %19 {strides = array<i32>} : memref<32x128xf32, #tpu.memory_space<vmem>>, vector<32x128xf32>,
    %c0_14 = arith.constant 0 : index
    %c0_15 = arith.constant 0 : index
    %21 = vector.load %arg5[%c0_14, %c0_15] : memref<128x128xbf16, #tpu.memory_space<vmem>>, vector<128x128xbf16>
    %c0_16 = arith.constant 0 : index
    %c0_17 = arith.constant 0 : index
    %22 = vector.load %arg10[%c0_16, %c0_17] : memref<8x128xf32, #tpu.memory_space<vmem>>, vector<8x128xf32>
    %c0_18 = arith.constant 0 : index
    %c0_19 = arith.constant 0 : index
    %23 = vector.load %arg11[%c0_18, %c0_19] : memref<32x128xf32, #tpu.memory_space<vmem>>, vector<8x128xf32>
    %24 = arith.truncf %22 : vector<8x128xf32> to vector<8x128xbf16>
    %cst_20 = arith.constant dense<0.000000e+00> : vector<8x128xf32>
    %25 = tpu.matmul %24, %21, %cst_20 {dimension_numbers = #tpu.dot_dimension_numbers<[1], [0], [0], [1], [0, 0, 1, 1], [], []>} : vector<8x128xbf16>, vector<128x128xbf16>, vector<8x128xf32> -> vector<8x128xf32>
    %26 = arith.addf %23, %25 : vector<8x128xf32>
    %27 = math.tanh %26 : vector<8x128xf32>
    %c0_21 = arith.constant 0 : index
    %c0_22 = arith.constant 0 : index
    %28 = vector.load %arg11[%c0_21, %c0_22] : memref<32x128xf32, #tpu.memory_space<vmem>>, vector<8x128xf32>
    tpu.vector_store %arg11[%c0_21, %c0_22], %27 {strides = array<i32>} : memref<32x128xf32, #tpu.memory_space<vmem>>, vector<8x128xf32>,
    %c8 = arith.constant 8 : index
    %c0_23 = arith.constant 0 : index
    %29 = vector.load %arg11[%c8, %c0_23] : memref<32x128xf32, #tpu.memory_space<vmem>>, vector<8x128xf32>
    %30 = arith.truncf %27 : vector<8x128xf32> to vector<8x128xbf16>
    %cst_24 = arith.constant dense<0.000000e+00> : vector<8x128xf32>
    %31 = tpu.matmul %30, %21, %cst_24 {dimension_numbers = #tpu.dot_dimension_numbers<[1], [0], [0], [1], [0, 0, 1, 1], [], []>} : vector<8x128xbf16>, vector<128x128xbf16>, vector<8x128xf32> -> vector<8x128xf32>
    %32 = arith.addf %29, %31 : vector<8x128xf32>
    %33 = math.tanh %32 : vector<8x128xf32>
    %c8_25 = arith.constant 8 : index
    %c0_26 = arith.constant 0 : index
    %34 = vector.load %arg11[%c8_25, %c0_26] : memref<32x128xf32, #tpu.memory_space<vmem>>, vector<8x128xf32>
    tpu.vector_store %arg11[%c8_25, %c0_26], %33 {strides = array<i32>} : memref<32x128xf32, #tpu.memory_space<vmem>>, vector<8x128xf32>,
    %c16 = arith.constant 16 : index
    %c0_27 = arith.constant 0 : index
    %35 = vector.load %arg11[%c16, %c0_27] : memref<32x128xf32, #tpu.memory_space<vmem>>, vector<8x128xf32>
    %36 = arith.truncf %33 : vector<8x128xf32> to vector<8x128xbf16>
    %cst_28 = arith.constant dense<0.000000e+00> : vector<8x128xf32>
    %37 = tpu.matmul %36, %21, %cst_28 {dimension_numbers = #tpu.dot_dimension_numbers<[1], [0], [0], [1], [0, 0, 1, 1], [], []>} : vector<8x128xbf16>, vector<128x128xbf16>, vector<8x128xf32> -> vector<8x128xf32>
    %38 = arith.addf %35, %37 : vector<8x128xf32>
    %39 = math.tanh %38 : vector<8x128xf32>
    %c16_29 = arith.constant 16 : index
    %c0_30 = arith.constant 0 : index
    %40 = vector.load %arg11[%c16_29, %c0_30] : memref<32x128xf32, #tpu.memory_space<vmem>>, vector<8x128xf32>
    tpu.vector_store %arg11[%c16_29, %c0_30], %39 {strides = array<i32>} : memref<32x128xf32, #tpu.memory_space<vmem>>, vector<8x128xf32>,
    %c24 = arith.constant 24 : index
    %c0_31 = arith.constant 0 : index
    %41 = vector.load %arg11[%c24, %c0_31] : memref<32x128xf32, #tpu.memory_space<vmem>>, vector<8x128xf32>
    %42 = arith.truncf %39 : vector<8x128xf32> to vector<8x128xbf16>
    %cst_32 = arith.constant dense<0.000000e+00> : vector<8x128xf32>
    %43 = tpu.matmul %42, %21, %cst_32 {dimension_numbers = #tpu.dot_dimension_numbers<[1], [0], [0], [1], [0, 0, 1, 1], [], []>} : vector<8x128xbf16>, vector<128x128xbf16>, vector<8x128xf32> -> vector<8x128xf32>
    %44 = arith.addf %41, %43 : vector<8x128xf32>
    %45 = math.tanh %44 : vector<8x128xf32>
    %c24_33 = arith.constant 24 : index
    %c0_34 = arith.constant 0 : index
    %46 = vector.load %arg11[%c24_33, %c0_34] : memref<32x128xf32, #tpu.memory_space<vmem>>, vector<8x128xf32>
    tpu.vector_store %arg11[%c24_33, %c0_34], %45 {strides = array<i32>} : memref<32x128xf32, #tpu.memory_space<vmem>>, vector<8x128xf32>,
    %c0_35 = arith.constant 0 : index
    %c0_36 = arith.constant 0 : index
    %47 = vector.load %arg10[%c0_35, %c0_36] : memref<8x128xf32, #tpu.memory_space<vmem>>, vector<8x128xf32>
    tpu.vector_store %arg10[%c0_35, %c0_36], %45 {strides = array<i32>} : memref<8x128xf32, #tpu.memory_space<vmem>>, vector<8x128xf32>,
    %c0_37 = arith.constant 0 : index
    %c0_38 = arith.constant 0 : index
    %48 = vector.load %arg11[%c0_37, %c0_38] : memref<32x128xf32, #tpu.memory_space<vmem>>, vector<32x128xf32>
    %49 = arith.truncf %48 : vector<32x128xf32> to vector<32x128xbf16>
    %c0_39 = arith.constant 0 : index
    %c0_40 = arith.constant 0 : index
    %50 = vector.load %arg7[%c0_39, %c0_40] : memref<128x128xbf16, #tpu.memory_space<vmem>>, vector<128x128xbf16>
    %cst_41 = arith.constant dense<0.000000e+00> : vector<32x128xf32>
    %51 = tpu.matmul %49, %50, %cst_41 {dimension_numbers = #tpu.dot_dimension_numbers<[1], [0], [0], [1], [0, 0, 1, 1], [], []>} : vector<32x128xbf16>, vector<128x128xbf16>, vector<32x128xf32> -> vector<32x128xf32>
    %c0_42 = arith.constant 0 : index
    %c0_43 = arith.constant 0 : index
    %52 = vector.load %arg8[%c0_42, %c0_43] : memref<1x128xf32, #tpu.memory_space<vmem>>, vector<1x128xf32>
    %53 = vector.broadcast %52 : vector<1x128xf32> to vector<32x128xf32>
    %54 = arith.addf %51, %53 : vector<32x128xf32>
    %cst_44 = arith.constant dense<0xFF800000> : vector<32xf32>
    %55 = vector.multi_reduction <maximumf>, %54, %cst_44 [1] : vector<32x128xf32> to vector<32xf32>
    %56 = vector.shape_cast %55 : vector<32xf32> to vector<32x1xf32>
    %57 = vector.broadcast %56 : vector<32x1xf32> to vector<32x128xf32>
    %58 = arith.subf %54, %57 : vector<32x128xf32>
    %59 = math.exp %58 : vector<32x128xf32>
    %cst_45 = arith.constant dense<0.000000e+00> : vector<32xf32>
    %60 = vector.multi_reduction <add>, %59, %cst_45 [1] : vector<32x128xf32> to vector<32xf32>
    %61 = vector.shape_cast %60 : vector<32xf32> to vector<32x1xf32>
    %62 = math.log %61 : vector<32x1xf32>
    %63 = arith.addf %56, %62 : vector<32x1xf32>
    %64 = vector.broadcast %63 : vector<32x1xf32> to vector<32x128xf32>
    %65 = arith.subf %54, %64 : vector<32x128xf32>
    %c0_46 = arith.constant 0 : index
    %c0_47 = arith.constant 0 : index
    %c0_48 = arith.constant 0 : index
    %66 = vector.load %arg9[%c0_46, %c0_47, %c0_48] : memref<1x32x128xf32, #tpu.memory_space<vmem>>, vector<1x32x128xf32>
    %67 = vector.shape_cast %66 : vector<1x32x128xf32> to vector<32x128xf32>
    %68 = vector.shape_cast %65 : vector<32x128xf32> to vector<1x32x128xf32>
    tpu.vector_store %arg9[%c0_46, %c0_47, %c0_48], %68 {strides = array<i32>} : memref<1x32x128xf32, #tpu.memory_space<vmem>>, vector<1x32x128xf32>,
    return
  }
  func.func @transform_0(%arg0: i32, %arg1: i32) -> (i32, i32, i32) {
    %c0_i32 = arith.constant 0 : i32
    %c0_i32_0 = arith.constant 0 : i32
    return %arg0, %arg1, %c0_i32 : i32, i32, i32
  }
  func.func @transform_1(%arg0: i32, %arg1: i32) -> (i32, i32) {
    %c0_i32 = arith.constant 0 : i32
    %c0_i32_0 = arith.constant 0 : i32
    %c0_i32_1 = arith.constant 0 : i32
    return %c0_i32, %c0_i32_0 : i32, i32
  }
  func.func @transform_2(%arg0: i32, %arg1: i32) -> (i32, i32) {
    %c0_i32 = arith.constant 0 : i32
    %c0_i32_0 = arith.constant 0 : i32
    %c0_i32_1 = arith.constant 0 : i32
    return %c0_i32, %c0_i32_0 : i32, i32
  }
  func.func @transform_3(%arg0: i32, %arg1: i32) -> (i32, i32) {
    %c0_i32 = arith.constant 0 : i32
    %c0_i32_0 = arith.constant 0 : i32
    %c0_i32_1 = arith.constant 0 : i32
    return %c0_i32, %c0_i32_0 : i32, i32
  }
  func.func @transform_4(%arg0: i32, %arg1: i32) -> (i32, i32) {
    %c0_i32 = arith.constant 0 : i32
    %c0_i32_0 = arith.constant 0 : i32
    %c0_i32_1 = arith.constant 0 : i32
    return %c0_i32, %c0_i32_0 : i32, i32
  }
  func.func @transform_5(%arg0: i32, %arg1: i32) -> (i32, i32) {
    %c0_i32 = arith.constant 0 : i32
    %c0_i32_0 = arith.constant 0 : i32
    %c0_i32_1 = arith.constant 0 : i32
    return %c0_i32, %c0_i32_0 : i32, i32
  }
  func.func @transform_6(%arg0: i32, %arg1: i32) -> (i32, i32) {
    %c0_i32 = arith.constant 0 : i32
    %c0_i32_0 = arith.constant 0 : i32
    %c0_i32_1 = arith.constant 0 : i32
    return %c0_i32, %c0_i32_0 : i32, i32
  }
  func.func @transform_7(%arg0: i32, %arg1: i32) -> (i32, i32, i32) {
    %c0_i32 = arith.constant 0 : i32
    %c0_i32_0 = arith.constant 0 : i32
    return %arg0, %arg1, %c0_i32 : i32, i32, i32
  }
}

</mosaic_0001>

<llo_original>
// kernel: simple_rnn_forward.1
$region0: #{simple_rnn_forward.1}
  #allocation0 [shape = 'u32[]', space=smem, size = 0x4, offset = 0x4, fixed_abs, tag = 'smem constant byte address 0x4 - core index']
  #allocation1 [shape = 'u32[144,128]{1,0:T(1,128)}', space=vmem, size = 0x12000, scoped, tag = 'internal scratch']
  #allocation2 [shape = 'f32[8,128]{1,0:T(8,128)}', space=vmem, size = 0x1000, scoped, tag = 'scratch operand']
  #allocation3 [shape = 'f32[32,128]{1,0:T(8,128)}', space=vmem, size = 0x4000, scoped, tag = 'scratch operand']
  %s0 = inlined_call_operand.vmem [shape: s32[1,64,1], index: 0, kind: input, shape index: {}]
  %s1 = inlined_call_operand.vmem [shape: bf16[128,128], index: 1, kind: input, shape index: {}]
  %s2 = inlined_call_operand.vmem [shape: bf16[128,128], index: 2, kind: input, shape index: {}]
  %s3 = inlined_call_operand.vmem [shape: bf16[128,128], index: 3, kind: input, shape index: {}]
  %s4 = inlined_call_operand.vmem [shape: f32[1,128], index: 4, kind: input, shape index: {}]
  %s5 = inlined_call_operand.vmem [shape: bf16[128,128], index: 5, kind: input, shape index: {}]
  %s6 = inlined_call_operand.vmem [shape: f32[1,128], index: 6, kind: input, shape index: {}]
  %s7 = inlined_call_operand.vmem [shape: f32[1,64,128], index: 7, kind: output, shape index: {}]
  %s8 = sld [smem:[#allocation0]]
  $region65: #{simple_rnn_forward.1} parent=0
    _
  %s10 = ssub.s32 1, %s8
  %s11 = scalar_select 0, %s10, %s8
  loop: start=0, step=1, limit=4
  $region2: #{simple_rnn_forward.1} parent=0 // loop_pre_header
    _
  $region3: #{simple_rnn_forward.1} parent=0 // loop_header
    %s13 = sphi 0, %s17
    %p14 = scmp.ge.s32.totalorder %s13, 4
    %s20 = sphi 0, %s32
    %s21 = sphi 0, %s28
    %s22 = sphi 0, %s20
    %s23 = sphi 0, %s21
    %s24 = sphi 0, %s22
    %s25 = sphi 0, %s23
    %s37 = sphi 0, %s39
    %s40 = sphi 0, %s37
    %s41 = sphi 0, %s40
    %s57 = sphi 0, %s41
    %s61 = sphi 0, %s61
    %s63 = sphi 0, %s61
    %s64 = sphi 0, %s63
    %s78 = sphi 0, %s64
    %s82 = sphi 0, %s82
    %s84 = sphi 0, %s82
    %s85 = sphi 0, %s84
    %s99 = sphi 0, %s85
    %s103 = sphi 0, %s103
    %s105 = sphi 0, %s103
    %s106 = sphi 0, %s105
    %s120 = sphi 0, %s106
    %s124 = sphi 0, %s124
    %s126 = sphi 0, %s124
    %s127 = sphi 0, %s126
    %s141 = sphi 0, %s127
    %s145 = sphi 0, %s145
    %s147 = sphi 0, %s145
    %s148 = sphi 0, %s147
    %s162 = sphi 0, %s148
    %s166 = sphi 0, %s166
    %s168 = sphi 0, %s166
    %s169 = sphi 0, %s168
    %s183 = sphi 0, %s169
    %s191 = sphi 0, %s193
    %s194 = sphi 0, %s191
    %s195 = sphi 0, %s194
    %s211 = sphi 0, %s195
  $region4: #{simple_rnn_forward.1} parent=0 // loop_header_branch
    %16 = sbr.rel (%p14) target = $region8
  $region5: #{simple_rnn_forward.1} parent=0 // loop_body
    %s18 = ssub.s32 %s13, 1
    %s19 = ssub.s32 %s13, 2
    %s26 = sadd.s32 1, %s21
    %p27 = scmp.ge.s32.totalorder %s26, 2
    %s28 = scalar_select %p27, 0, %s26
    %s29 = sadd.s32 1, %s20
    %s30 = scalar_select %p27, %s29, %s20
    %p31 = scmp.ge.s32.totalorder %s30, 1
    %s32 = scalar_select %p31, 0, %s30
    %s33 = ssub.s32 %s20, %s32
    %s34 = ssub.s32 %s21, %s28
    %s35 = sor.u32 %s33, %s34
    %p36 = scmp.eq.s32.totalorder %s35, 0
    %s38 = sadd.s32 %s37, 1
    %s39 = scalar_select %p36, %s37, %s38
    %p42 = pneg %p36
    %p43 = scmp.eq.s32.totalorder %s13, 1
    %p44 = por %p42, %p43
    %p45 = scmp.ne.s32.totalorder %s37, %s40
    %p46 = scmp.eq.s32.totalorder %s13, 0
    %p47 = por %p45, %p46
    %p48 = scmp.ne.s32.totalorder %s37, %s40
    %p49 = scmp.eq.s32.totalorder %s18, 1
    %p50 = por %p48, %p49
    %p51 = scmp.ne.s32.totalorder %s40, %s41
    %p52 = scmp.eq.s32.totalorder %s18, 0
    %p53 = por %p51, %p52
    %p54 = scmp.ne.s32.totalorder %s40, %s41
    %p55 = scmp.eq.s32.totalorder %s19, 1
    %p56 = por %p54, %p55
    %p58 = scmp.ne.s32.totalorder %s41, %s57
    %p59 = scmp.eq.s32.totalorder %s19, 0
    %p60 = por %p58, %p59
    %s62 = sadd.s32 %s61, 1
    %p65 = scmp.eq.s32.totalorder %s13, 1
    %p66 = scmp.ne.s32.totalorder %s61, %s63
    %p67 = scmp.eq.s32.totalorder %s13, 0
    %p68 = por %p66, %p67
    %p69 = scmp.ne.s32.totalorder %s61, %s63
    %p70 = scmp.eq.s32.totalorder %s18, 1
    %p71 = por %p69, %p70
    %p72 = scmp.ne.s32.totalorder %s63, %s64
    %p73 = scmp.eq.s32.totalorder %s18, 0
    %p74 = por %p72, %p73
    %p75 = scmp.ne.s32.totalorder %s63, %s64
    %p76 = scmp.eq.s32.totalorder %s19, 1
    %p77 = por %p75, %p76
    %p79 = scmp.ne.s32.totalorder %s64, %s78
    %p80 = scmp.eq.s32.totalorder %s19, 0
    %p81 = por %p79, %p80
    %s83 = sadd.s32 %s82, 1
    %p86 = scmp.eq.s32.totalorder %s13, 1
    %p87 = scmp.ne.s32.totalorder %s82, %s84
    %p88 = scmp.eq.s32.totalorder %s13, 0
    %p89 = por %p87, %p88
    %p90 = scmp.ne.s32.totalorder %s82, %s84
    %p91 = scmp.eq.s32.totalorder %s18, 1
    %p92 = por %p90, %p91
    %p93 = scmp.ne.s32.totalorder %s84, %s85
    %p94 = scmp.eq.s32.totalorder %s18, 0
    %p95 = por %p93, %p94
    %p96 = scmp.ne.s32.totalorder %s84, %s85
    %p97 = scmp.eq.s32.totalorder %s19, 1
    %p98 = por %p96, %p97
    %p100 = scmp.ne.s32.totalorder %s85, %s99
    %p101 = scmp.eq.s32.totalorder %s19, 0
    %p102 = por %p100, %p101
    %s104 = sadd.s32 %s103, 1
    %p107 = scmp.eq.s32.totalorder %s13, 1
    %p108 = scmp.ne.s32.totalorder %s103, %s105
    %p109 = scmp.eq.s32.totalorder %s13, 0
    %p110 = por %p108, %p109
    %p111 = scmp.ne.s32.totalorder %s103, %s105
    %p112 = scmp.eq.s32.totalorder %s18, 1
    %p113 = por %p111, %p112
    %p114 = scmp.ne.s32.totalorder %s105, %s106
    %p115 = scmp.eq.s32.totalorder %s18, 0
    %p116 = por %p114, %p115
    %p117 = scmp.ne.s32.totalorder %s105, %s106
    %p118 = scmp.eq.s32.totalorder %s19, 1
    %p119 = por %p117, %p118
    %p121 = scmp.ne.s32.totalorder %s106, %s120
    %p122 = scmp.eq.s32.totalorder %s19, 0
    %p123 = por %p121, %p122
    %s125 = sadd.s32 %s124, 1
    %p128 = scmp.eq.s32.totalorder %s13, 1
    %p129 = scmp.ne.s32.totalorder %s124, %s126
    %p130 = scmp.eq.s32.totalorder %s13, 0
    %p131 = por %p129, %p130
    %p132 = scmp.ne.s32.totalorder %s124, %s126
    %p133 = scmp.eq.s32.totalorder %s18, 1
    %p134 = por %p132, %p133
    %p135 = scmp.ne.s32.totalorder %s126, %s127
    %p136 = scmp.eq.s32.totalorder %s18, 0
    %p137 = por %p135, %p136
    %p138 = scmp.ne.s32.totalorder %s126, %s127
    %p139 = scmp.eq.s32.totalorder %s19, 1
    %p140 = por %p138, %p139
    %p142 = scmp.ne.s32.totalorder %s127, %s141
    %p143 = scmp.eq.s32.totalorder %s19, 0
    %p144 = por %p142, %p143
    %s146 = sadd.s32 %s145, 1
    %p149 = scmp.eq.s32.totalorder %s13, 1
    %p150 = scmp.ne.s32.totalorder %s145, %s147
    %p151 = scmp.eq.s32.totalorder %s13, 0
    %p152 = por %p150, %p151
    %p153 = scmp.ne.s32.totalorder %s145, %s147
    %p154 = scmp.eq.s32.totalorder %s18, 1
    %p155 = por %p153, %p154
    %p156 = scmp.ne.s32.totalorder %s147, %s148
    %p157 = scmp.eq.s32.totalorder %s18, 0
    %p158 = por %p156, %p157
    %p159 = scmp.ne.s32.totalorder %s147, %s148
    %p160 = scmp.eq.s32.totalorder %s19, 1
    %p161 = por %p159, %p160
    %p163 = scmp.ne.s32.totalorder %s148, %s162
    %p164 = scmp.eq.s32.totalorder %s19, 0
    %p165 = por %p163, %p164
    %s167 = sadd.s32 %s166, 1
    %p170 = scmp.eq.s32.totalorder %s13, 1
    %p171 = scmp.ne.s32.totalorder %s166, %s168
    %p172 = scmp.eq.s32.totalorder %s13, 0
    %p173 = por %p171, %p172
    %p174 = scmp.ne.s32.totalorder %s166, %s168
    %p175 = scmp.eq.s32.totalorder %s18, 1
    %p176 = por %p174, %p175
    %p177 = scmp.ne.s32.totalorder %s168, %s169
    %p178 = scmp.eq.s32.totalorder %s18, 0
    %p179 = por %p177, %p178
    %p180 = scmp.ne.s32.totalorder %s168, %s169
    %p181 = scmp.eq.s32.totalorder %s19, 1
    %p182 = por %p180, %p181
    %p184 = scmp.ne.s32.totalorder %s169, %s183
    %p185 = scmp.eq.s32.totalorder %s19, 0
    %p186 = por %p184, %p185
    %s187 = ssub.s32 %s20, %s32
    %s188 = ssub.s32 %s21, %s28
    %s189 = sor.u32 %s187, %s188
    %p190 = scmp.eq.s32.totalorder %s189, 0
    %s192 = sadd.s32 %s191, 1
    %s193 = scalar_select %p190, %s191, %s192
    %p196 = pneg %p190
    %p197 = scmp.eq.s32.totalorder %s13, 1
    %p198 = por %p196, %p197
    %p199 = scmp.ne.s32.totalorder %s191, %s194
    %p200 = scmp.eq.s32.totalorder %s13, 0
    %p201 = por %p199, %p200
    %p202 = scmp.ne.s32.totalorder %s191, %s194
    %p203 = scmp.eq.s32.totalorder %s18, 1
    %p204 = por %p202, %p203
    %p205 = scmp.ne.s32.totalorder %s194, %s195
    %p206 = scmp.eq.s32.totalorder %s18, 0
    %p207 = por %p205, %p206
    %p208 = scmp.ne.s32.totalorder %s194, %s195
    %p209 = scmp.eq.s32.totalorder %s19, 1
    %p210 = por %p208, %p209
    %p212 = scmp.ne.s32.totalorder %s195, %s211
    %p213 = scmp.eq.s32.totalorder %s19, 0
    %p214 = por %p212, %p213
    %p215 = scmp.le.s32.totalorder 1, %s13
    %p216 = scmp.lt.s32.totalorder %s13, 3
    %p217 = pnand %p215, %p216
    %p218 = pneg %p217
    // Predicated region
    $region9: #{simple_rnn_forward.1} parent=5 // pred_check
      _
    $region10: #{simple_rnn_forward.1} parent=5 // pred_check_branch
      %220 = sbr.rel (%p217) target = $region12
    $region11: #{simple_rnn_forward.1} parent=5 // pred_region
      %s221 = ssub.s32 %s13, 1
      // Predicated region
      $region13: #{simple_rnn_forward.1} parent=11 // pred_check
        %p222 = pneg %p74
      $region14: #{simple_rnn_forward.1} parent=11 // pred_check_branch
        %224 = sbr.rel (%p222) target = $region16
      $region15: #{simple_rnn_forward.1} parent=11 // pred_region
        _
      $region16: #{simple_rnn_forward.1} parent=11 // pred_fallthru
        _
      // Predicated region
      $region17: #{simple_rnn_forward.1} parent=11 // pred_check
        %p225 = pneg %p95
      $region18: #{simple_rnn_forward.1} parent=11 // pred_check_branch
        %227 = sbr.rel (%p225) target = $region20
      $region19: #{simple_rnn_forward.1} parent=11 // pred_region
        _
      $region20: #{simple_rnn_forward.1} parent=11 // pred_fallthru
        _
      // Predicated region
      $region21: #{simple_rnn_forward.1} parent=11 // pred_check
        %p228 = pneg %p116
      $region22: #{simple_rnn_forward.1} parent=11 // pred_check_branch
        %230 = sbr.rel (%p228) target = $region24
      $region23: #{simple_rnn_forward.1} parent=11 // pred_region
        _
      $region24: #{simple_rnn_forward.1} parent=11 // pred_fallthru
        _
      // Predicated region
      $region25: #{simple_rnn_forward.1} parent=11 // pred_check
        %p231 = pneg %p137
      $region26: #{simple_rnn_forward.1} parent=11 // pred_check_branch
        %233 = sbr.rel (%p231) target = $region28
      $region27: #{simple_rnn_forward.1} parent=11 // pred_region
        _
      $region28: #{simple_rnn_forward.1} parent=11 // pred_fallthru
        _
      // Predicated region
      $region29: #{simple_rnn_forward.1} parent=11 // pred_check
        %p234 = pneg %p158
      $region30: #{simple_rnn_forward.1} parent=11 // pred_check_branch
        %236 = sbr.rel (%p234) target = $region32
      $region31: #{simple_rnn_forward.1} parent=11 // pred_region
        _
      $region32: #{simple_rnn_forward.1} parent=11 // pred_fallthru
        _
      // Predicated region
      $region33: #{simple_rnn_forward.1} parent=11 // pred_check
        %p237 = pneg %p179
      $region34: #{simple_rnn_forward.1} parent=11 // pred_check_branch
        %239 = sbr.rel (%p237) target = $region36
      $region35: #{simple_rnn_forward.1} parent=11 // pred_region
        _
      $region36: #{simple_rnn_forward.1} parent=11 // pred_fallthru
        _
    $region12: #{simple_rnn_forward.1} parent=5 // pred_fallthru
      _
    %p240 = scmp.lt.s32.totalorder %s13, 2
    // Predicated region
    $region37: #{simple_rnn_forward.1} parent=5 // pred_check
      %p241 = pneg %p240
    $region38: #{simple_rnn_forward.1} parent=5 // pred_check_branch
      %243 = sbr.rel (%p241) target = $region40
    $region39: #{simple_rnn_forward.1} parent=5 // pred_region
      // Predicated region
      $region41: #{simple_rnn_forward.1} parent=39 // pred_check
        %p244 = pneg %p47
      $region42: #{simple_rnn_forward.1} parent=39 // pred_check_branch
        %246 = sbr.rel (%p244) target = $region44
      $region43: #{simple_rnn_forward.1} parent=39 // pred_region
        %s247 = smul.u32 4, %s21
        %p248 = scmp.lt.s32.totalorder %s20, 0
        %s249 = scalar_select %p248, %s20, 0
        %p250 = scmp.lt.s32.totalorder %s247, 7
        %s251 = scalar_select %p250, %s247, 7
        %s252 = smul.addr %s249, 8
        %s253 = sadd.s32 %s251, %s252
        %s254 = smul.addr %s253, 8
        %s255 = scalar_lea.vmem %s0, %s254
        %s256 = smul.u32 4, %s21
      $region44: #{simple_rnn_forward.1} parent=39 // pred_fallthru
        _
    $region40: #{simple_rnn_forward.1} parent=5 // pred_fallthru
      _
    %p257 = scmp.le.s32.totalorder 1, %s13
    %p258 = scmp.lt.s32.totalorder %s13, 3
    %p259 = pnand %p257, %p258
    %p260 = pneg %p259
    // Predicated region
    $region45: #{simple_rnn_forward.1} parent=5 // pred_check
      _
    $region46: #{simple_rnn_forward.1} parent=5 // pred_check_branch
      %262 = sbr.rel (%p259) target = $region48
    $region47: #{simple_rnn_forward.1} parent=5 // pred_region
      %s263 = ssub.s32 %s13, 1
      %s264 = smul.u32 4, %s23
      %p265 = scmp.lt.s32.totalorder %s22, 0
      %s266 = scalar_select %p265, %s22, 0
      %p267 = scmp.lt.s32.totalorder %s264, 7
      %s268 = scalar_select %p267, %s264, 7
      %s269 = smul.addr %s266, 8
      %s270 = sadd.s32 %s268, %s269
      %s271 = smul.addr %s270, 8
      %s272 = scalar_lea.vmem %s0, %s271
      %p273 = pneg %p53
      %p274 = pneg %p50
      %p275 = pneg %p74
      %p276 = pneg %p71
      %p277 = pneg %p95
      %p278 = pneg %p92
      %p279 = pneg %p116
      %p280 = pneg %p113
      %p281 = pneg %p137
      %p282 = pneg %p134
      %p283 = pneg %p158
      %p284 = pneg %p155
      %p285 = pneg %p179
      %p286 = pneg %p176
      %p287 = pneg %p207
      %p288 = pneg %p204
      %s289 = smul.u32 4, %s23
      %p290 = scmp.lt.s32.totalorder %s22, 0
      %s291 = scalar_select %p290, %s22, 0
      %p292 = scmp.lt.s32.totalorder %s289, 7
      %s293 = scalar_select %p292, %s289, 7
      %s294 = smul.addr %s291, 8
      %s295 = sadd.s32 %s293, %s294
      %s296 = smul.addr %s295, 8
      %s297 = scalar_lea.vmem %s7, %s296
      %s298 = smul.u32 4, %s23
      %p299 = scmp.lt.s32.totalorder %s22, 0
      %s300 = scalar_select %p299, %s22, 0
      %p301 = scmp.lt.s32.totalorder %s298, 7
      %s302 = scalar_select %p301, %s298, 7
      %s303 = smul.addr %s300, 8
      %s304 = sadd.s32 %s302, %s303
      %s305 = smul.addr %s304, 8
      %s306 = scalar_lea.vmem %s0, %s305
      %s307 = smul.u32 4, %s23
      %s308 = smul.u32 4, %s23
      %p309 = scmp.lt.s32.totalorder %s22, 0
      %s310 = scalar_select %p309, %s22, 0
      %p311 = scmp.lt.s32.totalorder %s308, 7
      %s312 = scalar_select %p311, %s308, 7
      %s313 = smul.addr %s310, 8
      %s314 = sadd.s32 %s312, %s313
      %s315 = smul.addr %s314, 8
      %s316 = scalar_lea.vmem %s7, %s315
      %s317 = smul.u32 4, %s23
      %p319 = scmp.eq.s32.totalorder %s23, 0
      // Predicated region
      $region49: #{simple_rnn_forward.1} parent=47 // pred_check
        %p320 = pneg %p319
      $region50: #{simple_rnn_forward.1} parent=47 // pred_check_branch
        %322 = sbr.rel (%p320) target = $region52
      $region51: #{simple_rnn_forward.1} parent=47 // pred_region
        %323 = vst [vmem:[#allocation2] sm:$0xff] 0.0
      $region52: #{simple_rnn_forward.1} parent=47 // pred_fallthru
        _
      %v324 = vld [vmem:[%s306] sm:$0xff]
      %v325 = vld [vmem:[%s306 + $0x8] sm:$0xff]
      %v326 = vld [vmem:[%s306 + $0x10] sm:$0xff]
      %v327 = vld [vmem:[%s306 + $0x18] sm:$0xff]
      %v328 = vlaneseq
      %v329 = vand.u32 %v328, 127
      %330 = vset.pattern.permute.xlu0 0
      %331 = vperm.xlu0 %330, %v324
      %v332 = vpop.permute.xlu0 %331
      %333 = vset.pattern.permute.xlu0 0
      %334 = vperm.xlu0 %333, %v325
      %v335 = vpop.permute.xlu0 %334
      %336 = vset.pattern.permute.xlu0 0
      %337 = vperm.xlu0 %336, %v326
      %v338 = vpop.permute.xlu0 %337
      %339 = vset.pattern.permute.xlu0 0
      %340 = vperm.xlu0 %339, %v327
      %v341 = vpop.permute.xlu0 %340
      %vm342 = vcmp.eq.s32.totalorder %v329, %v332
      %vm343 = vcmp.eq.s32.totalorder %v329, %v335
      %vm344 = vcmp.eq.s32.totalorder %v329, %v338
      %vm345 = vcmp.eq.s32.totalorder %v329, %v341
      %v346 = vsel %vm342, 1.0, 0.0
      %v347 = vsel %vm343, 1.0, 0.0
      %v348 = vsel %vm344, 1.0, 0.0
      %v349 = vsel %vm345, 1.0, 0.0
      %v350 = vpack.c.bf16 %v347, %v346
      %v351 = vpack.c.bf16 %v349, %v348
      %v352 = vld [vmem:[%s1] sm:$0xf]
      %v353 = vld [vmem:[%s1 + $0x4] sm:$0xf]
      %v354 = vld [vmem:[%s1 + $0x8] sm:$0xf]
      %v355 = vld [vmem:[%s1 + $0xc] sm:$0xf]
      %v356 = vld [vmem:[%s1 + $0x10] sm:$0xf]
      %v357 = vld [vmem:[%s1 + $0x14] sm:$0xf]
      %v358 = vld [vmem:[%s1 + $0x18] sm:$0xf]
      %v359 = vld [vmem:[%s1 + $0x1c] sm:$0xf]
      %v360 = vld [vmem:[%s1 + $0x20] sm:$0xf]
      %v361 = vld [vmem:[%s1 + $0x24] sm:$0xf]
      %v362 = vld [vmem:[%s1 + $0x28] sm:$0xf]
      %v363 = vld [vmem:[%s1 + $0x2c] sm:$0xf]
      %v364 = vld [vmem:[%s1 + $0x30] sm:$0xf]
      %v365 = vld [vmem:[%s1 + $0x34] sm:$0xf]
      %v366 = vld [vmem:[%s1 + $0x38] sm:$0xf]
      %v367 = vld [vmem:[%s1 + $0x3c] sm:$0xf]
      %v384 = vunpack.c.l.b16 %v352
      %v385 = vunpack.c.l.b16 %v353
      %v386 = vunpack.c.l.b16 %v354
      %v387 = vunpack.c.l.b16 %v355
      %v388 = vunpack.c.l.b16 %v356
      %v389 = vunpack.c.l.b16 %v357
      %v390 = vunpack.c.l.b16 %v358
      %v391 = vunpack.c.l.b16 %v359
      %v392 = vunpack.c.l.b16 %v360
      %v393 = vunpack.c.l.b16 %v361
      %v394 = vunpack.c.l.b16 %v362
      %v395 = vunpack.c.l.b16 %v363
      %v396 = vunpack.c.l.b16 %v364
      %v397 = vunpack.c.l.b16 %v365
      %v398 = vunpack.c.l.b16 %v366
      %v399 = vunpack.c.l.b16 %v367
      %v400 = vpack.c.b16 %v385, %v384
      %v401 = vpack.c.b16 %v387, %v386
      %v402 = vpack.c.b16 %v389, %v388
      %v403 = vpack.c.b16 %v391, %v390
      %v404 = vpack.c.b16 %v393, %v392
      %v405 = vpack.c.b16 %v395, %v394
      %v406 = vpack.c.b16 %v397, %v396
      %v407 = vpack.c.b16 %v399, %v398
      %416 = vmatprep.subr.bf16.mxu0 0
      %417 = vmatpush1.bf16.msra.mxu0 %v407
      %418 = vmatprep.subr.bf16.mxu0 0
      %419 = vmatpush1.bf16.msra.mxu0 %v406
      %420 = vmatprep.subr.bf16.mxu0 0
      %421 = vmatpush1.bf16.msra.mxu0 %v405
      %422 = vmatprep.subr.bf16.mxu0 0
      %423 = vmatpush1.bf16.msra.mxu0 %v404
      %424 = vmatprep.subr.bf16.mxu0 0
      %425 = vmatpush1.bf16.msra.mxu0 %v403
      %426 = vmatprep.subr.bf16.mxu0 0
      %427 = vmatpush1.bf16.msra.mxu0 %v402
      %428 = vmatprep.subr.bf16.mxu0 0
      %429 = vmatpush1.bf16.msra.mxu0 %v401
      %430 = vmatprep.subr.bf16.mxu0 0
      %431 = vmatpush1.bf16.msra.mxu0 %v400
      %432 = vmatprep.subr.bf16.mxu0 0
      %433 = vmatpush2.bf16.msra.mxu0 0
      %434 = vmatprep.subr.bf16.mxu0 0
      %435 = vmatpush2.bf16.msra.mxu0 0
      %436 = vmatprep.subr.bf16.mxu0 0
      %437 = vmatpush2.bf16.msra.mxu0 0
      %438 = vmatprep.subr.bf16.mxu0 0
      %439 = vmatpush2.bf16.msra.mxu0 0
      %440 = vmatprep.subr.bf16.mxu0 0
      %441 = vmatpush2.bf16.msra.mxu0 0
      %442 = vmatprep.subr.bf16.mxu0 0
      %443 = vmatpush2.bf16.msra.mxu0 0
      %444 = vmatprep.subr.bf16.mxu0 0
      %445 = vmatpush2.bf16.msra.mxu0 0
      %446 = vmatprep.subr.bf16.mxu0 0
      %447 = vmatpush2.bf16.msra.mxu0 0
      %448 = vmatprep.mubr.bf16.mxu0 0
      %449 = vmatmul.mubr.bf16.gmra.mxu0 %v350
      %v450 = vpop.f32.mrf.mxu0
      %v451 = vadd.f32 0.0, %v450
      %v452 = vpop.f32.mrf.mxu0
      %v453 = vpop.f32.mrf.mxu0
      %v454 = vadd.f32 0.0, %v453
      %v455 = vpop.f32.mrf.mxu0
      %456 = vmatprep.mubr.bf16.mxu0 0
      %457 = vmatmul.mubr.bf16.gmra.mxu0 %v351
      %v458 = vpop.f32.mrf.mxu0
      %v459 = vadd.f32 0.0, %v458
      %v460 = vpop.f32.mrf.mxu0
      %v461 = vpop.f32.mrf.mxu0
      %v462 = vadd.f32 0.0, %v461
      %v463 = vpop.f32.mrf.mxu0
      %464 = vdwg.mxu0
      %v465 = vpack.c.bf16 %v454, %v451
      %v466 = vpack.c.bf16 %v462, %v459
      %v467 = vld [vmem:[%s2] sm:$0xf]
      %v468 = vld [vmem:[%s2 + $0x4] sm:$0xf]
      %v469 = vld [vmem:[%s2 + $0x8] sm:$0xf]
      %v470 = vld [vmem:[%s2 + $0xc] sm:$0xf]
      %v471 = vld [vmem:[%s2 + $0x10] sm:$0xf]
      %v472 = vld [vmem:[%s2 + $0x14] sm:$0xf]
      %v473 = vld [vmem:[%s2 + $0x18] sm:$0xf]
      %v474 = vld [vmem:[%s2 + $0x1c] sm:$0xf]
      %v475 = vld [vmem:[%s2 + $0x20] sm:$0xf]
      %v476 = vld [vmem:[%s2 + $0x24] sm:$0xf]
      %v477 = vld [vmem:[%s2 + $0x28] sm:$0xf]
      %v478 = vld [vmem:[%s2 + $0x2c] sm:$0xf]
      %v479 = vld [vmem:[%s2 + $0x30] sm:$0xf]
      %v480 = vld [vmem:[%s2 + $0x34] sm:$0xf]
      %v481 = vld [vmem:[%s2 + $0x38] sm:$0xf]
      %v482 = vld [vmem:[%s2 + $0x3c] sm:$0xf]
      %v483 = vld [vmem:[%s4] sm:$0x1]
      %v485 = vlaneseq
      %v486 = vshrl.u32 %v485, 7
      %v487 = vsub.s32 0, %v486
      %v488 = vrot.slane %v483, %v487
      %v506 = vunpack.c.l.b16 %v467
      %v507 = vunpack.c.l.b16 %v468
      %v508 = vunpack.c.l.b16 %v469
      %v509 = vunpack.c.l.b16 %v470
      %v510 = vunpack.c.l.b16 %v471
      %v511 = vunpack.c.l.b16 %v472
      %v512 = vunpack.c.l.b16 %v473
      %v513 = vunpack.c.l.b16 %v474
      %v514 = vunpack.c.l.b16 %v475
      %v515 = vunpack.c.l.b16 %v476
      %v516 = vunpack.c.l.b16 %v477
      %v517 = vunpack.c.l.b16 %v478
      %v518 = vunpack.c.l.b16 %v479
      %v519 = vunpack.c.l.b16 %v480
      %v520 = vunpack.c.l.b16 %v481
      %v521 = vunpack.c.l.b16 %v482
      %v522 = vpack.c.b16 %v507, %v506
      %v523 = vpack.c.b16 %v509, %v508
      %v524 = vpack.c.b16 %v511, %v510
      %v525 = vpack.c.b16 %v513, %v512
      %v526 = vpack.c.b16 %v515, %v514
      %v527 = vpack.c.b16 %v517, %v516
      %v528 = vpack.c.b16 %v519, %v518
      %v529 = vpack.c.b16 %v521, %v520
      %538 = vmatprep.subr.bf16.mxu0 0
      %539 = vmatpush1.bf16.msra.mxu0 %v529
      %540 = vmatprep.subr.bf16.mxu0 0
      %541 = vmatpush1.bf16.msra.mxu0 %v528
      %542 = vmatprep.subr.bf16.mxu0 0
      %543 = vmatpush1.bf16.msra.mxu0 %v527
      %544 = vmatprep.subr.bf16.mxu0 0
      %545 = vmatpush1.bf16.msra.mxu0 %v526
      %546 = vmatprep.subr.bf16.mxu0 0
      %547 = vmatpush1.bf16.msra.mxu0 %v525
      %548 = vmatprep.subr.bf16.mxu0 0
      %549 = vmatpush1.bf16.msra.mxu0 %v524
      %550 = vmatprep.subr.bf16.mxu0 0
      %551 = vmatpush1.bf16.msra.mxu0 %v523
      %552 = vmatprep.subr.bf16.mxu0 0
      %553 = vmatpush1.bf16.msra.mxu0 %v522
      %554 = vmatprep.subr.bf16.mxu0 0
      %555 = vmatpush2.bf16.msra.mxu0 0
      %556 = vmatprep.subr.bf16.mxu0 0
      %557 = vmatpush2.bf16.msra.mxu0 0
      %558 = vmatprep.subr.bf16.mxu0 0
      %559 = vmatpush2.bf16.msra.mxu0 0
      %560 = vmatprep.subr.bf16.mxu0 0
      %561 = vmatpush2.bf16.msra.mxu0 0
      %562 = vmatprep.subr.bf16.mxu0 0
      %563 = vmatpush2.bf16.msra.mxu0 0
      %564 = vmatprep.subr.bf16.mxu0 0
      %565 = vmatpush2.bf16.msra.mxu0 0
      %566 = vmatprep.subr.bf16.mxu0 0
      %567 = vmatpush2.bf16.msra.mxu0 0
      %568 = vmatprep.subr.bf16.mxu0 0
      %569 = vmatpush2.bf16.msra.mxu0 0
      %570 = vmatprep.mubr.bf16.mxu0 0
      %571 = vmatmul.mubr.bf16.gmra.mxu0 %v465
      %v572 = vpop.f32.mrf.mxu0
      %v573 = vadd.f32 %v488, %v572
      %v574 = vpop.f32.mrf.mxu0
      %v575 = vpop.f32.mrf.mxu0
      %v576 = vadd.f32 %v488, %v575
      %v577 = vpop.f32.mrf.mxu0
      %578 = vmatprep.mubr.bf16.mxu0 0
      %579 = vmatmul.mubr.bf16.gmra.mxu0 %v466
      %v580 = vpop.f32.mrf.mxu0
      %v581 = vadd.f32 %v488, %v580
      %v582 = vpop.f32.mrf.mxu0
      %v583 = vpop.f32.mrf.mxu0
      %v584 = vadd.f32 %v488, %v583
      %v585 = vpop.f32.mrf.mxu0
      %586 = vdwg.mxu0
      %587 = vst [vmem:[#allocation3] sm:$0xff] %v573
      %588 = vst [vmem:[#allocation3 + $0x8] sm:$0xff] %v576
      %589 = vst [vmem:[#allocation3 + $0x10] sm:$0xff] %v581
      %590 = vst [vmem:[#allocation3 + $0x18] sm:$0xff] %v584
      %v591 = vld [vmem:[%s3] sm:$0xf]
      %v592 = vld [vmem:[%s3 + $0x4] sm:$0xf]
      %v593 = vld [vmem:[%s3 + $0x8] sm:$0xf]
      %v594 = vld [vmem:[%s3 + $0xc] sm:$0xf]
      %v595 = vld [vmem:[%s3 + $0x10] sm:$0xf]
      %v596 = vld [vmem:[%s3 + $0x14] sm:$0xf]
      %v597 = vld [vmem:[%s3 + $0x18] sm:$0xf]
      %v598 = vld [vmem:[%s3 + $0x1c] sm:$0xf]
      %v599 = vld [vmem:[%s3 + $0x20] sm:$0xf]
      %v600 = vld [vmem:[%s3 + $0x24] sm:$0xf]
      %v601 = vld [vmem:[%s3 + $0x28] sm:$0xf]
      %v602 = vld [vmem:[%s3 + $0x2c] sm:$0xf]
      %v603 = vld [vmem:[%s3 + $0x30] sm:$0xf]
      %v604 = vld [vmem:[%s3 + $0x34] sm:$0xf]
      %v605 = vld [vmem:[%s3 + $0x38] sm:$0xf]
      %v606 = vld [vmem:[%s3 + $0x3c] sm:$0xf]
      %v607 = vld [vmem:[#allocation2] sm:$0xff]
      %v608 = vld [vmem:[#allocation3] sm:$0xff]
      %v609 = vpack.c.bf16 %v607, %v607
      %v626 = vunpack.c.l.b16 %v591
      %v627 = vunpack.c.l.b16 %v592
      %v628 = vunpack.c.l.b16 %v593
      %v629 = vunpack.c.l.b16 %v594
      %v630 = vunpack.c.l.b16 %v595
      %v631 = vunpack.c.l.b16 %v596
      %v632 = vunpack.c.l.b16 %v597
      %v633 = vunpack.c.l.b16 %v598
      %v634 = vunpack.c.l.b16 %v599
      %v635 = vunpack.c.l.b16 %v600
      %v636 = vunpack.c.l.b16 %v601
      %v637 = vunpack.c.l.b16 %v602
      %v638 = vunpack.c.l.b16 %v603
      %v639 = vunpack.c.l.b16 %v604
      %v640 = vunpack.c.l.b16 %v605
      %v641 = vunpack.c.l.b16 %v606
      %v642 = vpack.c.b16 %v627, %v626
      %v643 = vpack.c.b16 %v629, %v628
      %v644 = vpack.c.b16 %v631, %v630
      %v645 = vpack.c.b16 %v633, %v632
      %v646 = vpack.c.b16 %v635, %v634
      %v647 = vpack.c.b16 %v637, %v636
      %v648 = vpack.c.b16 %v639, %v638
      %v649 = vpack.c.b16 %v641, %v640
      %658 = vmatprep.subr.bf16.mxu0 0
      %659 = vmatpush1.bf16.msra.mxu0 %v649
      %660 = vmatprep.subr.bf16.mxu0 0
      %661 = vmatpush1.bf16.msra.mxu0 %v648
      %662 = vmatprep.subr.bf16.mxu0 0
      %663 = vmatpush1.bf16.msra.mxu0 %v647
      %664 = vmatprep.subr.bf16.mxu0 0
      %665 = vmatpush1.bf16.msra.mxu0 %v646
      %666 = vmatprep.subr.bf16.mxu0 0
      %667 = vmatpush1.bf16.msra.mxu0 %v645
      %668 = vmatprep.subr.bf16.mxu0 0
      %669 = vmatpush1.bf16.msra.mxu0 %v644
      %670 = vmatprep.subr.bf16.mxu0 0
      %671 = vmatpush1.bf16.msra.mxu0 %v643
      %672 = vmatprep.subr.bf16.mxu0 0
      %673 = vmatpush1.bf16.msra.mxu0 %v642
      %674 = vmatprep.subr.bf16.mxu0 0
      %675 = vmatpush2.bf16.msra.mxu0 0
      %676 = vmatprep.subr.bf16.mxu0 0
      %677 = vmatpush2.bf16.msra.mxu0 0
      %678 = vmatprep.subr.bf16.mxu0 0
      %679 = vmatpush2.bf16.msra.mxu0 0
      %680 = vmatprep.subr.bf16.mxu0 0
      %681 = vmatpush2.bf16.msra.mxu0 0
      %682 = vmatprep.subr.bf16.mxu0 0
      %683 = vmatpush2.bf16.msra.mxu0 0
      %684 = vmatprep.subr.bf16.mxu0 0
      %685 = vmatpush2.bf16.msra.mxu0 0
      %686 = vmatprep.subr.bf16.mxu0 0
      %687 = vmatpush2.bf16.msra.mxu0 0
      %688 = vmatprep.subr.bf16.mxu0 0
      %689 = vmatpush2.bf16.msra.mxu0 0
      %690 = vmatprep.mubr.bf16.mxu0 0
      %691 = vmatmul.mubr.bf16.gmra.mxu0 %v609
      %v692 = vpop.f32.mrf.mxu0
      %v693 = vadd.f32 0.0, %v692
      %v694 = vpop.f32.mrf.mxu0
      %v695 = vpop.f32.mrf.mxu0
      %v696 = vpop.f32.mrf.mxu0
      %697 = vdwg.mxu0
      %v698 = vadd.f32 %v608, %v693
      %v699 = vtanh.pop %v698
      %700 = vst [vmem:[#allocation3] sm:$0xff] %v699
      %v701 = vld [vmem:[#allocation3 + $0x8] sm:$0xff]
      %v702 = vpack.c.bf16 %v699, %v699
      %703 = vmatprep.subr.bf16.mxu0 0
      %704 = vmatpush1.bf16.msra.mxu0 %v649
      %705 = vmatprep.subr.bf16.mxu0 0
      %706 = vmatpush1.bf16.msra.mxu0 %v648
      %707 = vmatprep.subr.bf16.mxu0 0
      %708 = vmatpush1.bf16.msra.mxu0 %v647
      %709 = vmatprep.subr.bf16.mxu0 0
      %710 = vmatpush1.bf16.msra.mxu0 %v646
      %711 = vmatprep.subr.bf16.mxu0 0
      %712 = vmatpush1.bf16.msra.mxu0 %v645
      %713 = vmatprep.subr.bf16.mxu0 0
      %714 = vmatpush1.bf16.msra.mxu0 %v644
      %715 = vmatprep.subr.bf16.mxu0 0
      %716 = vmatpush1.bf16.msra.mxu0 %v643
      %717 = vmatprep.subr.bf16.mxu0 0
      %718 = vmatpush1.bf16.msra.mxu0 %v642
      %719 = vmatprep.subr.bf16.mxu0 0
      %720 = vmatpush2.bf16.msra.mxu0 0
      %721 = vmatprep.subr.bf16.mxu0 0
      %722 = vmatpush2.bf16.msra.mxu0 0
      %723 = vmatprep.subr.bf16.mxu0 0
      %724 = vmatpush2.bf16.msra.mxu0 0
      %725 = vmatprep.subr.bf16.mxu0 0
      %726 = vmatpush2.bf16.msra.mxu0 0
      %727 = vmatprep.subr.bf16.mxu0 0
      %728 = vmatpush2.bf16.msra.mxu0 0
      %729 = vmatprep.subr.bf16.mxu0 0
      %730 = vmatpush2.bf16.msra.mxu0 0
      %731 = vmatprep.subr.bf16.mxu0 0
      %732 = vmatpush2.bf16.msra.mxu0 0
      %733 = vmatprep.subr.bf16.mxu0 0
      %734 = vmatpush2.bf16.msra.mxu0 0
      %735 = vmatprep.mubr.bf16.mxu0 0
      %736 = vmatmul.mubr.bf16.gmra.mxu0 %v702
      %v737 = vpop.f32.mrf.mxu0
      %v738 = vadd.f32 0.0, %v737
      %v739 = vpop.f32.mrf.mxu0
      %v740 = vpop.f32.mrf.mxu0
      %v741 = vpop.f32.mrf.mxu0
      %742 = vdwg.mxu0
      %v743 = vadd.f32 %v701, %v738
      %v744 = vtanh.pop %v743
      %745 = vst [vmem:[#allocation3 + $0x8] sm:$0xff] %v744
      %v746 = vld [vmem:[#allocation3 + $0x10] sm:$0xff]
      %v747 = vpack.c.bf16 %v744, %v744
      %748 = vmatprep.subr.bf16.mxu0 0
      %749 = vmatpush1.bf16.msra.mxu0 %v649
      %750 = vmatprep.subr.bf16.mxu0 0
      %751 = vmatpush1.bf16.msra.mxu0 %v648
      %752 = vmatprep.subr.bf16.mxu0 0
      %753 = vmatpush1.bf16.msra.mxu0 %v647
      %754 = vmatprep.subr.bf16.mxu0 0
      %755 = vmatpush1.bf16.msra.mxu0 %v646
      %756 = vmatprep.subr.bf16.mxu0 0
      %757 = vmatpush1.bf16.msra.mxu0 %v645
      %758 = vmatprep.subr.bf16.mxu0 0
      %759 = vmatpush1.bf16.msra.mxu0 %v644
      %760 = vmatprep.subr.bf16.mxu0 0
      %761 = vmatpush1.bf16.msra.mxu0 %v643
      %762 = vmatprep.subr.bf16.mxu0 0
      %763 = vmatpush1.bf16.msra.mxu0 %v642
      %764 = vmatprep.subr.bf16.mxu0 0
      %765 = vmatpush2.bf16.msra.mxu0 0
      %766 = vmatprep.subr.bf16.mxu0 0
      %767 = vmatpush2.bf16.msra.mxu0 0
      %768 = vmatprep.subr.bf16.mxu0 0
      %769 = vmatpush2.bf16.msra.mxu0 0
      %770 = vmatprep.subr.bf16.mxu0 0
      %771 = vmatpush2.bf16.msra.mxu0 0
      %772 = vmatprep.subr.bf16.mxu0 0
      %773 = vmatpush2.bf16.msra.mxu0 0
      %774 = vmatprep.subr.bf16.mxu0 0
      %775 = vmatpush2.bf16.msra.mxu0 0
      %776 = vmatprep.subr.bf16.mxu0 0
      %777 = vmatpush2.bf16.msra.mxu0 0
      %778 = vmatprep.subr.bf16.mxu0 0
      %779 = vmatpush2.bf16.msra.mxu0 0
      %780 = vmatprep.mubr.bf16.mxu0 0
      %781 = vmatmul.mubr.bf16.gmra.mxu0 %v747
      %v782 = vpop.f32.mrf.mxu0
      %v783 = vadd.f32 0.0, %v782
      %v784 = vpop.f32.mrf.mxu0
      %v785 = vpop.f32.mrf.mxu0
      %v786 = vpop.f32.mrf.mxu0
      %787 = vdwg.mxu0
      %v788 = vadd.f32 %v746, %v783
      %v789 = vtanh.pop %v788
      %790 = vst [vmem:[#allocation3 + $0x10] sm:$0xff] %v789
      %v791 = vld [vmem:[#allocation3 + $0x18] sm:$0xff]
      %v792 = vpack.c.bf16 %v789, %v789
      %793 = vmatprep.subr.bf16.mxu0 0
      %794 = vmatpush1.bf16.msra.mxu0 %v649
      %795 = vmatprep.subr.bf16.mxu0 0
      %796 = vmatpush1.bf16.msra.mxu0 %v648
      %797 = vmatprep.subr.bf16.mxu0 0
      %798 = vmatpush1.bf16.msra.mxu0 %v647
      %799 = vmatprep.subr.bf16.mxu0 0
      %800 = vmatpush1.bf16.msra.mxu0 %v646
      %801 = vmatprep.subr.bf16.mxu0 0
      %802 = vmatpush1.bf16.msra.mxu0 %v645
      %803 = vmatprep.subr.bf16.mxu0 0
      %804 = vmatpush1.bf16.msra.mxu0 %v644
      %805 = vmatprep.subr.bf16.mxu0 0
      %806 = vmatpush1.bf16.msra.mxu0 %v643
      %807 = vmatprep.subr.bf16.mxu0 0
      %808 = vmatpush1.bf16.msra.mxu0 %v642
      %809 = vmatprep.subr.bf16.mxu0 0
      %810 = vmatpush2.bf16.msra.mxu0 0
      %811 = vmatprep.subr.bf16.mxu0 0
      %812 = vmatpush2.bf16.msra.mxu0 0
      %813 = vmatprep.subr.bf16.mxu0 0
      %814 = vmatpush2.bf16.msra.mxu0 0
      %815 = vmatprep.subr.bf16.mxu0 0
      %816 = vmatpush2.bf16.msra.mxu0 0
      %817 = vmatprep.subr.bf16.mxu0 0
      %818 = vmatpush2.bf16.msra.mxu0 0
      %819 = vmatprep.subr.bf16.mxu0 0
      %820 = vmatpush2.bf16.msra.mxu0 0
      %821 = vmatprep.subr.bf16.mxu0 0
      %822 = vmatpush2.bf16.msra.mxu0 0
      %823 = vmatprep.subr.bf16.mxu0 0
      %824 = vmatpush2.bf16.msra.mxu0 0
      %825 = vmatprep.mubr.bf16.mxu0 0
      %826 = vmatmul.mubr.bf16.gmra.mxu0 %v792
      %v827 = vpop.f32.mrf.mxu0
      %v828 = vadd.f32 0.0, %v827
      %v829 = vpop.f32.mrf.mxu0
      %v830 = vpop.f32.mrf.mxu0
      %v831 = vpop.f32.mrf.mxu0
      %832 = vdwg.mxu0
      %v833 = vadd.f32 %v791, %v828
      %v834 = vtanh.pop %v833
      %835 = vst [vmem:[#allocation3 + $0x18] sm:$0xff] %v834
      %836 = vst [vmem:[#allocation2] sm:$0xff] %v834
      %v837 = vld [vmem:[#allocation3] sm:$0xff]
      %v838 = vld [vmem:[#allocation3 + $0x8] sm:$0xff]
      %v839 = vld [vmem:[#allocation3 + $0x10] sm:$0xff]
      %v840 = vld [vmem:[#allocation3 + $0x18] sm:$0xff]
      %v841 = vpack.c.bf16 %v838, %v837
      %v842 = vpack.c.bf16 %v840, %v839
      %v843 = vld [vmem:[%s5] sm:$0xf]
      %v844 = vld [vmem:[%s5 + $0x4] sm:$0xf]
      %v845 = vld [vmem:[%s5 + $0x8] sm:$0xf]
      %v846 = vld [vmem:[%s5 + $0xc] sm:$0xf]
      %v847 = vld [vmem:[%s5 + $0x10] sm:$0xf]
      %v848 = vld [vmem:[%s5 + $0x14] sm:$0xf]
      %v849 = vld [vmem:[%s5 + $0x18] sm:$0xf]
      %v850 = vld [vmem:[%s5 + $0x1c] sm:$0xf]
      %v851 = vld [vmem:[%s5 + $0x20] sm:$0xf]
      %v852 = vld [vmem:[%s5 + $0x24] sm:$0xf]
      %v853 = vld [vmem:[%s5 + $0x28] sm:$0xf]
      %v854 = vld [vmem:[%s5 + $0x2c] sm:$0xf]
      %v855 = vld [vmem:[%s5 + $0x30] sm:$0xf]
      %v856 = vld [vmem:[%s5 + $0x34] sm:$0xf]
      %v857 = vld [vmem:[%s5 + $0x38] sm:$0xf]
      %v858 = vld [vmem:[%s5 + $0x3c] sm:$0xf]
      %v859 = vld [vmem:[%s6] sm:$0x1]
      %v861 = vlaneseq
      %v862 = vshrl.u32 %v861, 7
      %v863 = vsub.s32 0, %v862
      %v864 = vrot.slane %v859, %v863
      %v882 = vunpack.c.l.b16 %v843
      %v883 = vunpack.c.l.b16 %v844
      %v884 = vunpack.c.l.b16 %v845
      %v885 = vunpack.c.l.b16 %v846
      %v886 = vunpack.c.l.b16 %v847
      %v887 = vunpack.c.l.b16 %v848
      %v888 = vunpack.c.l.b16 %v849
      %v889 = vunpack.c.l.b16 %v850
      %v890 = vunpack.c.l.b16 %v851
      %v891 = vunpack.c.l.b16 %v852
      %v892 = vunpack.c.l.b16 %v853
      %v893 = vunpack.c.l.b16 %v854
      %v894 = vunpack.c.l.b16 %v855
      %v895 = vunpack.c.l.b16 %v856
      %v896 = vunpack.c.l.b16 %v857
      %v897 = vunpack.c.l.b16 %v858
      %v898 = vpack.c.b16 %v883, %v882
      %v899 = vpack.c.b16 %v885, %v884
      %v900 = vpack.c.b16 %v887, %v886
      %v901 = vpack.c.b16 %v889, %v888
      %v902 = vpack.c.b16 %v891, %v890
      %v903 = vpack.c.b16 %v893, %v892
      %v904 = vpack.c.b16 %v895, %v894
      %v905 = vpack.c.b16 %v897, %v896
      %914 = vmatprep.subr.bf16.mxu0 0
      %915 = vmatpush1.bf16.msra.mxu0 %v905
      %916 = vmatprep.subr.bf16.mxu0 0
      %917 = vmatpush1.bf16.msra.mxu0 %v904
      %918 = vmatprep.subr.bf16.mxu0 0
      %919 = vmatpush1.bf16.msra.mxu0 %v903
      %920 = vmatprep.subr.bf16.mxu0 0
      %921 = vmatpush1.bf16.msra.mxu0 %v902
      %922 = vmatprep.subr.bf16.mxu0 0
      %923 = vmatpush1.bf16.msra.mxu0 %v901
      %924 = vmatprep.subr.bf16.mxu0 0
      %925 = vmatpush1.bf16.msra.mxu0 %v900
      %926 = vmatprep.subr.bf16.mxu0 0
      %927 = vmatpush1.bf16.msra.mxu0 %v899
      %928 = vmatprep.subr.bf16.mxu0 0
      %929 = vmatpush1.bf16.msra.mxu0 %v898
      %930 = vmatprep.subr.bf16.mxu0 0
      %931 = vmatpush2.bf16.msra.mxu0 0
      %932 = vmatprep.subr.bf16.mxu0 0
      %933 = vmatpush2.bf16.msra.mxu0 0
      %934 = vmatprep.subr.bf16.mxu0 0
      %935 = vmatpush2.bf16.msra.mxu0 0
      %936 = vmatprep.subr.bf16.mxu0 0
      %937 = vmatpush2.bf16.msra.mxu0 0
      %938 = vmatprep.subr.bf16.mxu0 0
      %939 = vmatpush2.bf16.msra.mxu0 0
      %940 = vmatprep.subr.bf16.mxu0 0
      %941 = vmatpush2.bf16.msra.mxu0 0
      %942 = vmatprep.subr.bf16.mxu0 0
      %943 = vmatpush2.bf16.msra.mxu0 0
      %944 = vmatprep.subr.bf16.mxu0 0
      %945 = vmatpush2.bf16.msra.mxu0 0
      %946 = vmatprep.mubr.bf16.mxu0 0
      %947 = vmatmul.mubr.bf16.gmra.mxu0 %v841
      %v948 = vpop.f32.mrf.mxu0
      %v949 = vadd.f32 %v864, %v948
      %v950 = vpop.f32.mrf.mxu0
      %v951 = vpop.f32.mrf.mxu0
      %v952 = vadd.f32 %v864, %v951
      %v953 = vpop.f32.mrf.mxu0
      %954 = vmatprep.mubr.bf16.mxu0 0
      %955 = vmatmul.mubr.bf16.gmra.mxu0 %v842
      %v956 = vpop.f32.mrf.mxu0
      %v957 = vadd.f32 %v864, %v956
      %v958 = vpop.f32.mrf.mxu0
      %v959 = vpop.f32.mrf.mxu0
      %v960 = vadd.f32 %v864, %v959
      %v961 = vpop.f32.mrf.mxu0
      %962 = vdwg.mxu0
      %963 = vmax.xlane.f32.xlu0 %v949
      %v964 = vpop.xlane.xlu0 %963
      %965 = vmax.xlane.f32.xlu0 %v952
      %v966 = vpop.xlane.xlu0 %965
      %967 = vmax.xlane.f32.xlu0 %v957
      %v968 = vpop.xlane.xlu0 %967
      %969 = vmax.xlane.f32.xlu0 %v960
      %v970 = vpop.xlane.xlu0 %969
      %v971 = vsub.f32 %v949, %v964
      %v972 = vsub.f32 %v952, %v966
      %v973 = vsub.f32 %v957, %v968
      %v974 = vsub.f32 %v960, %v970
      %v975 = vmul.f32 %v971, 1.442695
      %v976 = vpow.pop %v975
      %v977 = vmul.f32 %v972, 1.442695
      %v978 = vpow.pop %v977
      %v979 = vmul.f32 %v973, 1.442695
      %v980 = vpow.pop %v979
      %v981 = vmul.f32 %v974, 1.442695
      %v982 = vpow.pop %v981
      %983 = vadd.xlane.f32.xlu0 %v976
      %v984 = vpop.xlane.xlu0 %983
      %985 = vadd.xlane.f32.xlu0 %v978
      %v986 = vpop.xlane.xlu0 %985
      %987 = vadd.xlane.f32.xlu0 %v980
      %v988 = vpop.xlane.xlu0 %987
      %989 = vadd.xlane.f32.xlu0 %v982
      %v990 = vpop.xlane.xlu0 %989
      %v991 = vlog2.pop %v984
      %v992 = vmul.f32 %v991, 0.6931472
      %v993 = vlog2.pop %v986
      %v994 = vmul.f32 %v993, 0.6931472
      %v995 = vlog2.pop %v988
      %v996 = vmul.f32 %v995, 0.6931472
      %v997 = vlog2.pop %v990
      %v998 = vmul.f32 %v997, 0.6931472
      %v999 = vadd.f32 %v964, %v992
      %v1000 = vadd.f32 %v966, %v994
      %v1001 = vadd.f32 %v968, %v996
      %v1002 = vadd.f32 %v970, %v998
      %v1003 = vsub.f32 %v949, %v999
      %v1004 = vsub.f32 %v952, %v1000
      %v1005 = vsub.f32 %v957, %v1001
      %v1006 = vsub.f32 %v960, %v1002
      %1007 = vst [vmem:[%s316] sm:$0xff] %v1003
      %1008 = vst [vmem:[%s316 + $0x8] sm:$0xff] %v1004
      %1009 = vst [vmem:[%s316 + $0x10] sm:$0xff] %v1005
      %1010 = vst [vmem:[%s316 + $0x18] sm:$0xff] %v1006
      %s1011 = smul.u32 4, %s23
      %p1012 = scmp.lt.s32.totalorder %s22, 0
      %s1013 = scalar_select %p1012, %s22, 0
      %p1014 = scmp.lt.s32.totalorder %s1011, 7
      %s1015 = scalar_select %p1014, %s1011, 7
      %s1016 = smul.addr %s1013, 8
      %s1017 = sadd.s32 %s1015, %s1016
      %s1018 = smul.addr %s1017, 8
      %s1019 = scalar_lea.vmem %s7, %s1018
      // Predicated region
      $region53: #{simple_rnn_forward.1} parent=47 // pred_check
        %p1020 = pneg %p204
      $region54: #{simple_rnn_forward.1} parent=47 // pred_check_branch
        %1022 = sbr.rel (%p1020) target = $region56
      $region55: #{simple_rnn_forward.1} parent=47 // pred_region
        %s1023 = smul.u32 4, %s23
      $region56: #{simple_rnn_forward.1} parent=47 // pred_fallthru
        _
    $region48: #{simple_rnn_forward.1} parent=5 // pred_fallthru
      _
    %p1024 = scmp.le.s32.totalorder 2, %s13
    // Predicated region
    $region57: #{simple_rnn_forward.1} parent=5 // pred_check
      %p1025 = pneg %p1024
    $region58: #{simple_rnn_forward.1} parent=5 // pred_check_branch
      %1027 = sbr.rel (%p1025) target = $region60
    $region59: #{simple_rnn_forward.1} parent=5 // pred_region
      %s1028 = ssub.s32 %s13, 2
      // Predicated region
      $region61: #{simple_rnn_forward.1} parent=59 // pred_check
        %p1029 = pneg %p210
      $region62: #{simple_rnn_forward.1} parent=59 // pred_check_branch
        %1031 = sbr.rel (%p1029) target = $region64
      $region63: #{simple_rnn_forward.1} parent=59 // pred_region
        %s1032 = smul.u32 4, %s25
        %p1033 = scmp.lt.s32.totalorder %s24, 0
        %s1034 = scalar_select %p1033, %s24, 0
        %p1035 = scmp.lt.s32.totalorder %s1032, 7
        %s1036 = scalar_select %p1035, %s1032, 7
        %s1037 = smul.addr %s1034, 8
        %s1038 = sadd.s32 %s1036, %s1037
        %s1039 = smul.addr %s1038, 8
        %s1040 = scalar_lea.vmem %s7, %s1039
      $region64: #{simple_rnn_forward.1} parent=59 // pred_fallthru
        _
    $region60: #{simple_rnn_forward.1} parent=5 // pred_fallthru
      _
  $region6: #{simple_rnn_forward.1} parent=0 // loop_footer
    %s17 = sadd.s32 1, %s13
  $region7: #{simple_rnn_forward.1} parent=0 // loop_footer_branch
    %12 = sbr.rel target = $region3
  $region8: #{simple_rnn_forward.1} parent=0 // loop_exit
    _

</llo_original>
